<compile_context>
chip_gen: v7x
topology: tpu7x:2x2x1
jax: 0.10.0
libtpu: 0.0.40
codegen_flags: <defaults>
</compile_context>

<pallas_src>
import math

import jax
import jax.numpy as jnp
from jax.experimental import pallas as pl
from jax.experimental.pallas import tpu as pltpu

FEATURES_DIM = 768  # fixed by `f.view(-1, 768)` in ClassifierBase.forward

_LANES = 128
_SUBLANES = 8
_TM_MAX = 1024            # f tiles stay f32 in VMEM (in-kernel bf16 cast)
_TN_MAX = 512             # class-dim tile cap for large heads
_VMEM_LIMIT_BYTES = 32 * 1024 * 1024


def _round_up(x: int, m: int) -> int:
    return ((x + m - 1) // m) * m


def _head_kernel(f_ref, w_ref, b_ref, o_ref):
    """One (TM, TN) output tile: o = f @ W + b (MXU, f32 accumulation).

    f_ref: (TM, 768) f32  -- cast to bf16 on the VPU here (free filler in a
                             DMA-bound kernel; avoids a wrapper-side HBM copy)
    w_ref: (768, TN) bf16, b_ref: (1, TN) f32, o_ref: (TM, TN) f32
    """
    f_bf16 = f_ref[...].astype(jnp.bfloat16)
    o_ref[...] = (
        jnp.dot(f_bf16, w_ref[...], preferred_element_type=jnp.float32)
        + b_ref[...]
    )


def prepare_head_params(w, b):
    """One-time prep of the head parameters for the kernel.

    w: (768, C) f32, b: (C,) f32
    -> w_bf16 (768, c_pad) bf16, bias (1, c_pad) f32, with c_pad a multiple of
       128 (and of 512 when the head is large, so TN=512 tiles divide it).
    """
    D, C = w.shape
    assert D == FEATURES_DIM
    c_pad = _round_up(C, _LANES)
    if c_pad > _TN_MAX:
        c_pad = _round_up(C, _TN_MAX)
    w_p = w.astype(jnp.bfloat16)
    b_p = b.reshape(1, C).astype(jnp.float32)
    if c_pad != C:
        w_p = jnp.pad(w_p, ((0, 0), (0, c_pad - C)))
        b_p = jnp.pad(b_p, ((0, 0), (0, c_pad - C)))
    return w_p, b_p


def pallas_linear_head(f, w_bf16, bias_f32, num_classes):
    """y = f @ W + b via a batch/class-tiled Pallas kernel.

    f: (B, 768) f32 (cast to bf16 in-kernel), w_bf16: (768, c_pad) bf16,
    bias_f32: (1, c_pad) f32 -> (B, num_classes) f32.
    """
    B, D = f.shape
    D2, c_pad = w_bf16.shape
    assert D == D2 == FEATURES_DIM
    assert c_pad % _LANES == 0

    # --- class-dim tiling: lane-dense (multiple of 128) output tiles --------
    tn = c_pad if c_pad <= _TN_MAX else _TN_MAX
    c_tiles = c_pad // tn

    # --- batch-dim tiling ----------------------------------------------------
    # >= 2 batch tiles whenever B allows, so a "parallel" axis exists for the
    # two v7x TensorCores; costs only one extra ~0.35us grid step elsewhere.
    tm_full = _round_up(B, _SUBLANES)
    if tm_full >= 2 * _SUBLANES:
        tm = _round_up(pl.cdiv(B, 2), _SUBLANES)
    else:
        tm = tm_full
    tm = min(tm, _TM_MAX)
    b_tiles = pl.cdiv(B, tm)  # ragged last tile is masked by Pallas (no jnp.pad)

    # --- grid order: keep the operand with the largest redundant traffic
    # resident across the inner axis -----------------------------------------
    redundant_w = (b_tiles - 1) * D * c_pad * 2   # if batch-outer / class-inner
    redundant_f = (c_tiles - 1) * B * D * 4       # if class-outer / batch-inner
    class_outer = redundant_w >= redundant_f

    if class_outer:
        grid = (c_tiles, b_tiles)                 # inner axis = batch -> W resident
        f_map = lambda j, i: (i, 0)
        w_map = lambda j, i: (0, j)
        o_map = lambda j, i: (i, j)
    else:
        grid = (b_tiles, c_tiles)                 # inner axis = class -> f resident
        f_map = lambda i, j: (i, 0)
        w_map = lambda i, j: (0, j)
        o_map = lambda i, j: (i, j)

    cost = pl.CostEstimate(
        flops=2 * B * D * c_pad,
        transcendentals=0,
        bytes_accessed=(
            B * D * 4            # f (f32, read once in the chosen order)
            + D * c_pad * 2      # W (bf16)
            + c_pad * 4          # bias (f32)
            + B * c_pad * 4      # out (f32)
        ),
    )

    out = pl.pallas_call(
        _head_kernel,
        out_shape=jax.ShapeDtypeStruct((B, c_pad), jnp.float32),
        grid=grid,
        in_specs=[
            pl.BlockSpec((tm, D), f_map),    # activation tile per batch block
            pl.BlockSpec((D, tn), w_map),    # weight tile per class block
            pl.BlockSpec((1, tn), w_map),    # bias tile per class block
        ],
        out_specs=pl.BlockSpec((tm, tn), o_map),
        compiler_params=pltpu.CompilerParams(
            dimension_semantics=("parallel", "parallel"),
            vmem_limit_bytes=_VMEM_LIMIT_BYTES,
        ),
        cost_estimate=cost,
    )(f, w_bf16, bias_f32)

    if c_pad != num_classes:
        out = out[:, :num_classes]
    return out


class ClassifierBaseJAX:
    """JAX/Pallas port of ClassifierBase with default bottleneck/head."""

    def __init__(self, num_classes: int, key):
        self.num_classes = num_classes
        self._features_dim = FEATURES_DIM
        # nn.Linear(768, num_classes) init: U(-1/sqrt(in), 1/sqrt(in))
        kw, kb = jax.random.split(key)
        bound = 1.0 / math.sqrt(self._features_dim)
        # stored as (in_features, num_classes) = W^T of torch's (out, in)
        self.head_w = jax.random.uniform(
            kw, (self._features_dim, num_classes), jnp.float32, -bound, bound
        )
        self.head_b = jax.random.uniform(
            kb, (num_classes,), jnp.float32, -bound, bound
        )
        # Kernel operands: cast + lane-pad ONCE, not per forward call.
        self._w_bf16, self._bias = prepare_head_params(self.head_w, self.head_b)

    @property
    def features_dim(self) -> int:
        return self._features_dim

    def _backbone(self, x):
        # TODO(synk): user-supplied backbone; identity pass-through here.
        return x

    def _bottleneck(self, f):
        # default bottleneck is nn.Identity()
        return f

    def _head(self, f):
        return pallas_linear_head(f, self._w_bf16, self._bias, self.num_classes)

    def __call__(self, x1, x2=None, choice=0):
        if x2 is None:
            f = self._backbone(x1)
            f = f.reshape(-1, FEATURES_DIM)
            f = self._bottleneck(f)
            return self._head(f)
        else:
            # original: f1, f2 = backbone(x1, x2, choice); identity backbone here.
            f1, f2 = self._backbone(x1), self._backbone(x2)
            f1 = self._bottleneck(f1.reshape(-1, FEATURES_DIM))
            f2 = self._bottleneck(f2.reshape(-1, FEATURES_DIM))
            # Two head calls: avoids materializing a concat copy of both
            # activation tensors (costlier than the saved W re-DMA for
            # small/medium class counts).
            return (self._head(f1), self._head(f2))


if __name__ == "__main__":
    key = jax.random.PRNGKey(0)
    k_param, k_x1, k_x2 = jax.random.split(key, 3)

    num_classes = 10
    batch = 2

    model = ClassifierBaseJAX(num_classes, k_param)

    # backbone output features (post-backbone, pre-view): (B, 768)
    x1 = jax.random.normal(k_x1, (batch, FEATURES_DIM), jnp.float32)
    x2 = jax.random.normal(k_x2, (batch, FEATURES_DIM), jnp.float32)

    # single-input path
    preds = model(x1)
    preds = jax.block_until_ready(preds)
    assert preds.shape == (batch, num_classes)

    # dual-input path
    p1, p2 = model(x1, x2, choice=0)
    p1 = jax.block_until_ready(p1)
    p2 = jax.block_until_ready(p2)
    assert p1.shape == (batch, num_classes) and p2.shape == (batch, num_classes)

    # correctness check vs plain JAX reference (bf16 MXU path -> loose tol)
    ref1 = x1 @ model.head_w + model.head_b
    ref2 = x2 @ model.head_w + model.head_b
    assert jnp.allclose(preds, ref1, atol=2e-2, rtol=2e-2)
    assert jnp.allclose(p1, ref1, atol=2e-2, rtol=2e-2)
    assert jnp.allclose(p2, ref2, atol=2e-2, rtol=2e-2)
    # dual path must agree with the single-input path bit-for-bit
    assert jnp.array_equal(p1, preds)

    print("KERNEL_OK")
</pallas_src>

<mosaic_0001>
module attributes {stable_mosaic.version = 11 : i64} {
  func.func @_head_kernel(%arg0: i32, %arg1: i32, %arg2: memref<8x768xf32, #tpu.memory_space<vmem>>, %arg3: memref<768x128xbf16, #tpu.memory_space<vmem>>, %arg4: memref<1x128xf32, #tpu.memory_space<vmem>>, %arg5: memref<8x128xf32, #tpu.memory_space<vmem>>) attributes {dimension_semantics = [#tpu.dimension_semantics<parallel>, #tpu.dimension_semantics<parallel>], iteration_bounds = array<i64: 1, 1>, scalar_prefetch = 0 : i64, scratch_operands = 0 : i64, tpu.core_type = #tpu.core_type<tc>, window_params = [{transform_indices = @transform_0, window_bounds = array<i64: 8, 768>}, {transform_indices = @transform_1, window_bounds = array<i64: 768, 128>}, {transform_indices = @transform_2, window_bounds = array<i64: 1, 128>}, {transform_indices = @transform_3, window_bounds = array<i64: 8, 128>}]} {
    %c0 = arith.constant 0 : index
    %c0_0 = arith.constant 0 : index
    %0 = vector.load %arg2[%c0, %c0_0] : memref<8x768xf32, #tpu.memory_space<vmem>>, vector<8x768xf32>
    %1 = arith.truncf %0 : vector<8x768xf32> to vector<8x768xbf16>
    %c0_1 = arith.constant 0 : index
    %c0_2 = arith.constant 0 : index
    %2 = vector.load %arg3[%c0_1, %c0_2] : memref<768x128xbf16, #tpu.memory_space<vmem>>, vector<768x128xbf16>
    %cst = arith.constant dense<0.000000e+00> : vector<8x128xf32>
    %3 = tpu.matmul %1, %2, %cst {dimension_numbers = #tpu.dot_dimension_numbers<[1], [0], [0], [1], [0, 0, 1, 1], [], []>} : vector<8x768xbf16>, vector<768x128xbf16>, vector<8x128xf32> -> vector<8x128xf32>
    %c0_3 = arith.constant 0 : index
    %c0_4 = arith.constant 0 : index
    %4 = vector.load %arg4[%c0_3, %c0_4] : memref<1x128xf32, #tpu.memory_space<vmem>>, vector<1x128xf32>
    %5 = vector.broadcast %4 : vector<1x128xf32> to vector<8x128xf32>
    %6 = arith.addf %3, %5 : vector<8x128xf32>
    %c0_5 = arith.constant 0 : index
    %c0_6 = arith.constant 0 : index
    %7 = vector.load %arg5[%c0_5, %c0_6] : memref<8x128xf32, #tpu.memory_space<vmem>>, vector<8x128xf32>
    tpu.vector_store %arg5[%c0_5, %c0_6], %6 {strides = array<i32>} : memref<8x128xf32, #tpu.memory_space<vmem>>, vector<8x128xf32>,
    return
  }
  func.func @transform_0(%arg0: i32, %arg1: i32) -> (i32, i32) {
    %c0_i32 = arith.constant 0 : i32
    %c0_i32_0 = arith.constant 0 : i32
    return %arg1, %c0_i32 : i32, i32
  }
  func.func @transform_1(%arg0: i32, %arg1: i32) -> (i32, i32) {
    %c0_i32 = arith.constant 0 : i32
    %c0_i32_0 = arith.constant 0 : i32
    return %c0_i32, %arg0 : i32, i32
  }
  func.func @transform_2(%arg0: i32, %arg1: i32) -> (i32, i32) {
    %c0_i32 = arith.constant 0 : i32
    %c0_i32_0 = arith.constant 0 : i32
    return %c0_i32, %arg0 : i32, i32
  }
  func.func @transform_3(%arg0: i32, %arg1: i32) -> (i32, i32) {
    %c0_i32 = arith.constant 0 : i32
    return %arg1, %arg0 : i32, i32
  }
}

</mosaic_0001>

<llo_original>
// kernel: tpu_custom_call.1
$region0: #{tpu_custom_call.1}
  #allocation0 [shape = 'u32[]', space=smem, size = 0x4, offset = 0x4, fixed_abs, tag = 'smem constant byte address 0x4 - core index']
  #allocation1 [shape = 'u32[144,128]{1,0:T(1,128)}', space=vmem, size = 0x12000, scoped, tag = 'internal scratch']
  %s0 = inlined_call_operand.hbm [shape: f32[2,768], index: 0, kind: input, shape index: {}]
  %s1 = inlined_call_operand.hbm [shape: bf16[768,128], index: 1, kind: input, shape index: {}]
  %s2 = inlined_call_operand.vmem [shape: f32[1,128], index: 2, kind: input, shape index: {}]
  %s3 = inlined_call_operand.hbm [shape: f32[2,128], index: 3, kind: output, shape index: {}]
  %s4 = sld [smem:[#allocation0]]
  $region30: #{tpu_custom_call.1} parent=0
    _
  %s6 = ssub.s32 1, %s4
  %s7 = scalar_select 0, %s6, %s4
  $region1: #{tpu_custom_call.1} parent=0
    #allocation2 [shape = 'u8[24576]{0}', space=vmem, size = 0x6000, scoped, tag = 'input window, operand 0, single buffered']
    #allocation3 [shape = 's32[1]{0}', space=sflag, size = 0x4, scoped, tag = 'scoped memory for tpu_custom_call.1']
    #allocation4 [shape = 's32[1]{0}', space=sflag, size = 0x4, scoped, tag = 'scoped memory for tpu_custom_call.1']
    #allocation5 [shape = 'u8[196608]{0}', space=vmem, size = 0x30000, scoped, tag = 'input window, operand 1, single buffered']
    #allocation6 [shape = 's32[1]{0}', space=sflag, size = 0x4, scoped, tag = 'scoped memory for tpu_custom_call.1']
    #allocation7 [shape = 'u8[4096]{0}', space=vmem, size = 0x1000, scoped, tag = 'output window, operand 0, single buffered']
    %8 = vsyncpa [#allocation3], 0
    %9 = vsyncpa [#allocation6], 0
    %10 = vsyncpa [#allocation4], 0
    // Predicated region
    $region2: #{tpu_custom_call.1} parent=1 // pred_check
      _
    $region3: #{tpu_custom_call.1} parent=1 // pred_check_branch
      %12 = sbr.rel (0) target = $region5
    $region4: #{tpu_custom_call.1} parent=1 // pred_region
      %s14 = ssub.s32 768, 192
      %15 = vsyncadd [#allocation3], %s14
      %s16 = sshll.u32 [#allocation2], 4
      %s17 = int_to_ptr.vmem [resolvable:$true] %s16
      %22 = dma.hbm_to_vmem [thread:$0]  %s0, 192, %s17, [#allocation3], 192, 192, 12
    $region5: #{tpu_custom_call.1} parent=1 // pred_fallthru
      _
    // Predicated region
    $region6: #{tpu_custom_call.1} parent=1 // pred_check
      _
    $region7: #{tpu_custom_call.1} parent=1 // pred_check_branch
      %24 = sbr.rel (0) target = $region9
    $region8: #{tpu_custom_call.1} parent=1 // pred_region
      %s26 = ssub.s32 6144, 6144
      %27 = vsyncadd [#allocation6], %s26
      %s28 = sshll.u32 [#allocation5], 4
      %s29 = int_to_ptr.vmem [resolvable:$true] %s28
      %34 = dma.hbm_to_vmem [thread:$0]  %s1, 6144, %s29, [#allocation6], 64, 64, 4
    $region9: #{tpu_custom_call.1} parent=1 // pred_fallthru
      _
    // Predicated region
    $region10: #{tpu_custom_call.1} parent=1 // pred_check
      _
    $region11: #{tpu_custom_call.1} parent=1 // pred_check_branch
      %36 = sbr.rel (0) target = $region13
    $region12: #{tpu_custom_call.1} parent=1 // pred_region
      _
    $region13: #{tpu_custom_call.1} parent=1 // pred_fallthru
      _
    // Predicated region
    $region14: #{tpu_custom_call.1} parent=1 // pred_check
      _
    $region15: #{tpu_custom_call.1} parent=1 // pred_check_branch
      %38 = sbr.rel (0) target = $region17
    $region16: #{tpu_custom_call.1} parent=1 // pred_region
      %39 = dma.done [#allocation3], 768
    $region17: #{tpu_custom_call.1} parent=1 // pred_fallthru
      _
    // Predicated region
    $region18: #{tpu_custom_call.1} parent=1 // pred_check
      _
    $region19: #{tpu_custom_call.1} parent=1 // pred_check_branch
      %41 = sbr.rel (0) target = $region21
    $region20: #{tpu_custom_call.1} parent=1 // pred_region
      %42 = dma.done [#allocation6], 6144
    $region21: #{tpu_custom_call.1} parent=1 // pred_fallthru
      _
    %v44 = vld [vmem:[#allocation2] sm:$0xff]
    %v45 = vld [vmem:[#allocation2 + $0x8] sm:$0xf]
    %v46 = vld [vmem:[#allocation2 + $0xc] sm:$0xff]
    %v47 = vld [vmem:[#allocation2 + $0x14] sm:$0xf]
    %v48 = vld [vmem:[#allocation2 + $0x18] sm:$0xff]
    %v49 = vld [vmem:[#allocation2 + $0x20] sm:$0xf]
    %v50 = vld [vmem:[#allocation2 + $0x24] sm:$0xff]
    %v51 = vld [vmem:[#allocation2 + $0x2c] sm:$0xf]
    %v60 = vcombine.low %v44, %v46
    %v61 = vcombine.high %v44, %v46
    %v62 = vcombine.low %v48, %v50
    %v63 = vcombine.high %v48, %v50
    %v65 = vunpack.c.l.s4 1983009808
    %v66 = vunpack.c.0.s8 %v65
    %v67 = vlaneseq
    %v68 = vshrl.u32 %v67, 7
    %v69 = vsub.s32 %v66, %v68
    %v70 = vrot.slane %v60, %v69
    %v72 = vunpack.c.l.s4 1983009808
    %v73 = vunpack.c.0.s8 %v72
    %v74 = vlaneseq
    %v75 = vshrl.u32 %v74, 7
    %v76 = vsub.s32 %v73, %v75
    %v77 = vrot.slane %v61, %v76
    %v79 = vunpack.c.l.s4 1983009808
    %v80 = vunpack.c.0.s8 %v79
    %v81 = vlaneseq
    %v82 = vshrl.u32 %v81, 7
    %v83 = vsub.s32 %v80, %v82
    %v84 = vrot.slane %v62, %v83
    %v86 = vunpack.c.l.s4 1983009808
    %v87 = vunpack.c.0.s8 %v86
    %v88 = vlaneseq
    %v89 = vshrl.u32 %v88, 7
    %v90 = vsub.s32 %v87, %v89
    %v91 = vrot.slane %v63, %v90
    %v92 = vcombine.low %v70, %v84
    %v93 = vcombine.high %v70, %v84
    %v94 = vcombine.low %v77, %v91
    %v95 = vcombine.high %v77, %v91
    %v96 = vcombine.low %v45, %v47
    %v97 = vcombine.low %v49, %v51
    %v99 = vunpack.c.l.s4 1983009808
    %v100 = vunpack.c.0.s8 %v99
    %v101 = vlaneseq
    %v102 = vshrl.u32 %v101, 7
    %v103 = vsub.s32 %v100, %v102
    %v104 = vrot.slane %v96, %v103
    %v106 = vunpack.c.l.s4 1983009808
    %v107 = vunpack.c.0.s8 %v106
    %v108 = vlaneseq
    %v109 = vshrl.u32 %v108, 7
    %v110 = vsub.s32 %v107, %v109
    %v111 = vrot.slane %v97, %v110
    %v112 = vcombine.low %v104, %v111
    %v113 = vcombine.high %v104, %v111
    %v120 = vpack.c.bf16 %v92, %v92
    %v121 = vpack.c.bf16 %v93, %v93
    %v122 = vpack.c.bf16 %v94, %v94
    %v123 = vpack.c.bf16 %v95, %v95
    %v124 = vpack.c.bf16 %v112, %v112
    %v125 = vpack.c.bf16 %v113, %v113
    %v126 = vld [vmem:[#allocation5] sm:$0xf]
    %v127 = vld [vmem:[#allocation5 + $0x4] sm:$0xf]
    %v128 = vld [vmem:[#allocation5 + $0x8] sm:$0xf]
    %v129 = vld [vmem:[#allocation5 + $0xc] sm:$0xf]
    %v130 = vld [vmem:[#allocation5 + $0x10] sm:$0xf]
    %v131 = vld [vmem:[#allocation5 + $0x14] sm:$0xf]
    %v132 = vld [vmem:[#allocation5 + $0x18] sm:$0xf]
    %v133 = vld [vmem:[#allocation5 + $0x1c] sm:$0xf]
    %v134 = vld [vmem:[#allocation5 + $0x20] sm:$0xf]
    %v135 = vld [vmem:[#allocation5 + $0x24] sm:$0xf]
    %v136 = vld [vmem:[#allocation5 + $0x28] sm:$0xf]
    %v137 = vld [vmem:[#allocation5 + $0x2c] sm:$0xf]
    %v138 = vld [vmem:[#allocation5 + $0x30] sm:$0xf]
    %v139 = vld [vmem:[#allocation5 + $0x34] sm:$0xf]
    %v140 = vld [vmem:[#allocation5 + $0x38] sm:$0xf]
    %v141 = vld [vmem:[#allocation5 + $0x3c] sm:$0xf]
    %v142 = vld [vmem:[#allocation5 + $0x40] sm:$0xf]
    %v143 = vld [vmem:[#allocation5 + $0x44] sm:$0xf]
    %v144 = vld [vmem:[#allocation5 + $0x48] sm:$0xf]
    %v145 = vld [vmem:[#allocation5 + $0x4c] sm:$0xf]
    %v146 = vld [vmem:[#allocation5 + $0x50] sm:$0xf]
    %v147 = vld [vmem:[#allocation5 + $0x54] sm:$0xf]
    %v148 = vld [vmem:[#allocation5 + $0x58] sm:$0xf]
    %v149 = vld [vmem:[#allocation5 + $0x5c] sm:$0xf]
    %v150 = vld [vmem:[#allocation5 + $0x60] sm:$0xf]
    %v151 = vld [vmem:[#allocation5 + $0x64] sm:$0xf]
    %v152 = vld [vmem:[#allocation5 + $0x68] sm:$0xf]
    %v153 = vld [vmem:[#allocation5 + $0x6c] sm:$0xf]
    %v154 = vld [vmem:[#allocation5 + $0x70] sm:$0xf]
    %v155 = vld [vmem:[#allocation5 + $0x74] sm:$0xf]
    %v156 = vld [vmem:[#allocation5 + $0x78] sm:$0xf]
    %v157 = vld [vmem:[#allocation5 + $0x7c] sm:$0xf]
    %v158 = vld [vmem:[#allocation5 + $0x80] sm:$0xf]
    %v159 = vld [vmem:[#allocation5 + $0x84] sm:$0xf]
    %v160 = vld [vmem:[#allocation5 + $0x88] sm:$0xf]
    %v161 = vld [vmem:[#allocation5 + $0x8c] sm:$0xf]
    %v162 = vld [vmem:[#allocation5 + $0x90] sm:$0xf]
    %v163 = vld [vmem:[#allocation5 + $0x94] sm:$0xf]
    %v164 = vld [vmem:[#allocation5 + $0x98] sm:$0xf]
    %v165 = vld [vmem:[#allocation5 + $0x9c] sm:$0xf]
    %v166 = vld [vmem:[#allocation5 + $0xa0] sm:$0xf]
    %v167 = vld [vmem:[#allocation5 + $0xa4] sm:$0xf]
    %v168 = vld [vmem:[#allocation5 + $0xa8] sm:$0xf]
    %v169 = vld [vmem:[#allocation5 + $0xac] sm:$0xf]
    %v170 = vld [vmem:[#allocation5 + $0xb0] sm:$0xf]
    %v171 = vld [vmem:[#allocation5 + $0xb4] sm:$0xf]
    %v172 = vld [vmem:[#allocation5 + $0xb8] sm:$0xf]
    %v173 = vld [vmem:[#allocation5 + $0xbc] sm:$0xf]
    %v174 = vld [vmem:[#allocation5 + $0xc0] sm:$0xf]
    %v175 = vld [vmem:[#allocation5 + $0xc4] sm:$0xf]
    %v176 = vld [vmem:[#allocation5 + $0xc8] sm:$0xf]
    %v177 = vld [vmem:[#allocation5 + $0xcc] sm:$0xf]
    %v178 = vld [vmem:[#allocation5 + $0xd0] sm:$0xf]
    %v179 = vld [vmem:[#allocation5 + $0xd4] sm:$0xf]
    %v180 = vld [vmem:[#allocation5 + $0xd8] sm:$0xf]
    %v181 = vld [vmem:[#allocation5 + $0xdc] sm:$0xf]
    %v182 = vld [vmem:[#allocation5 + $0xe0] sm:$0xf]
    %v183 = vld [vmem:[#allocation5 + $0xe4] sm:$0xf]
    %v184 = vld [vmem:[#allocation5 + $0xe8] sm:$0xf]
    %v185 = vld [vmem:[#allocation5 + $0xec] sm:$0xf]
    %v186 = vld [vmem:[#allocation5 + $0xf0] sm:$0xf]
    %v187 = vld [vmem:[#allocation5 + $0xf4] sm:$0xf]
    %v188 = vld [vmem:[#allocation5 + $0xf8] sm:$0xf]
    %v189 = vld [vmem:[#allocation5 + $0xfc] sm:$0xf]
    %v190 = vld [vmem:[#allocation5 + $0x100] sm:$0xf]
    %v191 = vld [vmem:[#allocation5 + $0x104] sm:$0xf]
    %v192 = vld [vmem:[#allocation5 + $0x108] sm:$0xf]
    %v193 = vld [vmem:[#allocation5 + $0x10c] sm:$0xf]
    %v194 = vld [vmem:[#allocation5 + $0x110] sm:$0xf]
    %v195 = vld [vmem:[#allocation5 + $0x114] sm:$0xf]
    %v196 = vld [vmem:[#allocation5 + $0x118] sm:$0xf]
    %v197 = vld [vmem:[#allocation5 + $0x11c] sm:$0xf]
    %v198 = vld [vmem:[#allocation5 + $0x120] sm:$0xf]
    %v199 = vld [vmem:[#allocation5 + $0x124] sm:$0xf]
    %v200 = vld [vmem:[#allocation5 + $0x128] sm:$0xf]
    %v201 = vld [vmem:[#allocation5 + $0x12c] sm:$0xf]
    %v202 = vld [vmem:[#allocation5 + $0x130] sm:$0xf]
    %v203 = vld [vmem:[#allocation5 + $0x134] sm:$0xf]
    %v204 = vld [vmem:[#allocation5 + $0x138] sm:$0xf]
    %v205 = vld [vmem:[#allocation5 + $0x13c] sm:$0xf]
    %v206 = vld [vmem:[#allocation5 + $0x140] sm:$0xf]
    %v207 = vld [vmem:[#allocation5 + $0x144] sm:$0xf]
    %v208 = vld [vmem:[#allocation5 + $0x148] sm:$0xf]
    %v209 = vld [vmem:[#allocation5 + $0x14c] sm:$0xf]
    %v210 = vld [vmem:[#allocation5 + $0x150] sm:$0xf]
    %v211 = vld [vmem:[#allocation5 + $0x154] sm:$0xf]
    %v212 = vld [vmem:[#allocation5 + $0x158] sm:$0xf]
    %v213 = vld [vmem:[#allocation5 + $0x15c] sm:$0xf]
    %v214 = vld [vmem:[#allocation5 + $0x160] sm:$0xf]
    %v215 = vld [vmem:[#allocation5 + $0x164] sm:$0xf]
    %v216 = vld [vmem:[#allocation5 + $0x168] sm:$0xf]
    %v217 = vld [vmem:[#allocation5 + $0x16c] sm:$0xf]
    %v218 = vld [vmem:[#allocation5 + $0x170] sm:$0xf]
    %v219 = vld [vmem:[#allocation5 + $0x174] sm:$0xf]
    %v220 = vld [vmem:[#allocation5 + $0x178] sm:$0xf]
    %v221 = vld [vmem:[#allocation5 + $0x17c] sm:$0xf]
    %v222 = vld [vmem:[%s2] sm:$0x1]
    %v224 = vlaneseq
    %v225 = vshrl.u32 %v224, 7
    %v226 = vsub.s32 0, %v225
    %v227 = vrot.slane %v222, %v226
    %v325 = vunpack.c.l.b16 %v126
    %v326 = vunpack.c.l.b16 %v127
    %v327 = vunpack.c.l.b16 %v128
    %v328 = vunpack.c.l.b16 %v129
    %v329 = vunpack.c.l.b16 %v130
    %v330 = vunpack.c.l.b16 %v131
    %v331 = vunpack.c.l.b16 %v132
    %v332 = vunpack.c.l.b16 %v133
    %v333 = vunpack.c.l.b16 %v134
    %v334 = vunpack.c.l.b16 %v135
    %v335 = vunpack.c.l.b16 %v136
    %v336 = vunpack.c.l.b16 %v137
    %v337 = vunpack.c.l.b16 %v138
    %v338 = vunpack.c.l.b16 %v139
    %v339 = vunpack.c.l.b16 %v140
    %v340 = vunpack.c.l.b16 %v141
    %v341 = vunpack.c.l.b16 %v142
    %v342 = vunpack.c.l.b16 %v143
    %v343 = vunpack.c.l.b16 %v144
    %v344 = vunpack.c.l.b16 %v145
    %v345 = vunpack.c.l.b16 %v146
    %v346 = vunpack.c.l.b16 %v147
    %v347 = vunpack.c.l.b16 %v148
    %v348 = vunpack.c.l.b16 %v149
    %v349 = vunpack.c.l.b16 %v150
    %v350 = vunpack.c.l.b16 %v151
    %v351 = vunpack.c.l.b16 %v152
    %v352 = vunpack.c.l.b16 %v153
    %v353 = vunpack.c.l.b16 %v154
    %v354 = vunpack.c.l.b16 %v155
    %v355 = vunpack.c.l.b16 %v156
    %v356 = vunpack.c.l.b16 %v157
    %v357 = vunpack.c.l.b16 %v158
    %v358 = vunpack.c.l.b16 %v159
    %v359 = vunpack.c.l.b16 %v160
    %v360 = vunpack.c.l.b16 %v161
    %v361 = vunpack.c.l.b16 %v162
    %v362 = vunpack.c.l.b16 %v163
    %v363 = vunpack.c.l.b16 %v164
    %v364 = vunpack.c.l.b16 %v165
    %v365 = vunpack.c.l.b16 %v166
    %v366 = vunpack.c.l.b16 %v167
    %v367 = vunpack.c.l.b16 %v168
    %v368 = vunpack.c.l.b16 %v169
    %v369 = vunpack.c.l.b16 %v170
    %v370 = vunpack.c.l.b16 %v171
    %v371 = vunpack.c.l.b16 %v172
    %v372 = vunpack.c.l.b16 %v173
    %v373 = vunpack.c.l.b16 %v174
    %v374 = vunpack.c.l.b16 %v175
    %v375 = vunpack.c.l.b16 %v176
    %v376 = vunpack.c.l.b16 %v177
    %v377 = vunpack.c.l.b16 %v178
    %v378 = vunpack.c.l.b16 %v179
    %v379 = vunpack.c.l.b16 %v180
    %v380 = vunpack.c.l.b16 %v181
    %v381 = vunpack.c.l.b16 %v182
    %v382 = vunpack.c.l.b16 %v183
    %v383 = vunpack.c.l.b16 %v184
    %v384 = vunpack.c.l.b16 %v185
    %v385 = vunpack.c.l.b16 %v186
    %v386 = vunpack.c.l.b16 %v187
    %v387 = vunpack.c.l.b16 %v188
    %v388 = vunpack.c.l.b16 %v189
    %v389 = vunpack.c.l.b16 %v190
    %v390 = vunpack.c.l.b16 %v191
    %v391 = vunpack.c.l.b16 %v192
    %v392 = vunpack.c.l.b16 %v193
    %v393 = vunpack.c.l.b16 %v194
    %v394 = vunpack.c.l.b16 %v195
    %v395 = vunpack.c.l.b16 %v196
    %v396 = vunpack.c.l.b16 %v197
    %v397 = vunpack.c.l.b16 %v198
    %v398 = vunpack.c.l.b16 %v199
    %v399 = vunpack.c.l.b16 %v200
    %v400 = vunpack.c.l.b16 %v201
    %v401 = vunpack.c.l.b16 %v202
    %v402 = vunpack.c.l.b16 %v203
    %v403 = vunpack.c.l.b16 %v204
    %v404 = vunpack.c.l.b16 %v205
    %v405 = vunpack.c.l.b16 %v206
    %v406 = vunpack.c.l.b16 %v207
    %v407 = vunpack.c.l.b16 %v208
    %v408 = vunpack.c.l.b16 %v209
    %v409 = vunpack.c.l.b16 %v210
    %v410 = vunpack.c.l.b16 %v211
    %v411 = vunpack.c.l.b16 %v212
    %v412 = vunpack.c.l.b16 %v213
    %v413 = vunpack.c.l.b16 %v214
    %v414 = vunpack.c.l.b16 %v215
    %v415 = vunpack.c.l.b16 %v216
    %v416 = vunpack.c.l.b16 %v217
    %v417 = vunpack.c.l.b16 %v218
    %v418 = vunpack.c.l.b16 %v219
    %v419 = vunpack.c.l.b16 %v220
    %v420 = vunpack.c.l.b16 %v221
    %v421 = vpack.c.b16 %v326, %v325
    %v422 = vpack.c.b16 %v328, %v327
    %v423 = vpack.c.b16 %v330, %v329
    %v424 = vpack.c.b16 %v332, %v331
    %v425 = vpack.c.b16 %v334, %v333
    %v426 = vpack.c.b16 %v336, %v335
    %v427 = vpack.c.b16 %v338, %v337
    %v428 = vpack.c.b16 %v340, %v339
    %v429 = vpack.c.b16 %v342, %v341
    %v430 = vpack.c.b16 %v344, %v343
    %v431 = vpack.c.b16 %v346, %v345
    %v432 = vpack.c.b16 %v348, %v347
    %v433 = vpack.c.b16 %v350, %v349
    %v434 = vpack.c.b16 %v352, %v351
    %v435 = vpack.c.b16 %v354, %v353
    %v436 = vpack.c.b16 %v356, %v355
    %v437 = vpack.c.b16 %v358, %v357
    %v438 = vpack.c.b16 %v360, %v359
    %v439 = vpack.c.b16 %v362, %v361
    %v440 = vpack.c.b16 %v364, %v363
    %v441 = vpack.c.b16 %v366, %v365
    %v442 = vpack.c.b16 %v368, %v367
    %v443 = vpack.c.b16 %v370, %v369
    %v444 = vpack.c.b16 %v372, %v371
    %v445 = vpack.c.b16 %v374, %v373
    %v446 = vpack.c.b16 %v376, %v375
    %v447 = vpack.c.b16 %v378, %v377
    %v448 = vpack.c.b16 %v380, %v379
    %v449 = vpack.c.b16 %v382, %v381
    %v450 = vpack.c.b16 %v384, %v383
    %v451 = vpack.c.b16 %v386, %v385
    %v452 = vpack.c.b16 %v388, %v387
    %v453 = vpack.c.b16 %v390, %v389
    %v454 = vpack.c.b16 %v392, %v391
    %v455 = vpack.c.b16 %v394, %v393
    %v456 = vpack.c.b16 %v396, %v395
    %v457 = vpack.c.b16 %v398, %v397
    %v458 = vpack.c.b16 %v400, %v399
    %v459 = vpack.c.b16 %v402, %v401
    %v460 = vpack.c.b16 %v404, %v403
    %v461 = vpack.c.b16 %v406, %v405
    %v462 = vpack.c.b16 %v408, %v407
    %v463 = vpack.c.b16 %v410, %v409
    %v464 = vpack.c.b16 %v412, %v411
    %v465 = vpack.c.b16 %v414, %v413
    %v466 = vpack.c.b16 %v416, %v415
    %v467 = vpack.c.b16 %v418, %v417
    %v468 = vpack.c.b16 %v420, %v419
    %517 = vmatprep.subr.bf16.mxu0 0
    %518 = vmatpush1.bf16.msra.mxu0 %v421
    %519 = vmatprep.subr.bf16.mxu0 0
    %520 = vmatpush1.bf16.msra.mxu0 %v422
    %521 = vmatprep.subr.bf16.mxu0 0
    %522 = vmatpush1.bf16.msra.mxu0 %v423
    %523 = vmatprep.subr.bf16.mxu0 0
    %524 = vmatpush1.bf16.msra.mxu0 %v424
    %525 = vmatprep.subr.bf16.mxu0 0
    %526 = vmatpush1.bf16.msra.mxu0 %v425
    %527 = vmatprep.subr.bf16.mxu0 0
    %528 = vmatpush1.bf16.msra.mxu0 %v426
    %529 = vmatprep.subr.bf16.mxu0 0
    %530 = vmatpush1.bf16.msra.mxu0 %v427
    %531 = vmatprep.subr.bf16.mxu0 0
    %532 = vmatpush1.bf16.msra.mxu0 %v428
    %533 = vmatprep.subr.bf16.mxu0 0
    %534 = vmatpush1.bf16.msra.mxu0 %v429
    %535 = vmatprep.subr.bf16.mxu0 0
    %536 = vmatpush1.bf16.msra.mxu0 %v430
    %537 = vmatprep.subr.bf16.mxu0 0
    %538 = vmatpush1.bf16.msra.mxu0 %v431
    %539 = vmatprep.subr.bf16.mxu0 0
    %540 = vmatpush1.bf16.msra.mxu0 %v432
    %541 = vmatprep.subr.bf16.mxu0 0
    %542 = vmatpush1.bf16.msra.mxu0 %v433
    %543 = vmatprep.subr.bf16.mxu0 0
    %544 = vmatpush1.bf16.msra.mxu0 %v434
    %545 = vmatprep.subr.bf16.mxu0 0
    %546 = vmatpush1.bf16.msra.mxu0 %v435
    %547 = vmatprep.subr.bf16.mxu0 0
    %548 = vmatpush1.bf16.msra.mxu0 %v436
    %549 = vmatprep.mubr.bf16.mxu0 %v121
    %550 = vmatmul.mubr.bf16.gmra.mrb[0].mxu0 %v120
    %v551 = vpop.f32.mrb[0].mxu0
    %v552 = vadd.f32 %v227, %v551
    %v553 = vpop.f32.mrb[0].mxu0
    %v554 = vpop.f32.mrb[0].mxu0
    %v555 = vpop.f32.mrb[0].mxu0
    %556 = vdwg.mxu0
    %557 = vmatprep.subr.bf16.mxu0 0
    %558 = vmatpush1.bf16.msra.mxu0 %v437
    %559 = vmatprep.subr.bf16.mxu0 0
    %560 = vmatpush1.bf16.msra.mxu0 %v438
    %561 = vmatprep.subr.bf16.mxu0 0
    %562 = vmatpush1.bf16.msra.mxu0 %v439
    %563 = vmatprep.subr.bf16.mxu0 0
    %564 = vmatpush1.bf16.msra.mxu0 %v440
    %565 = vmatprep.subr.bf16.mxu0 0
    %566 = vmatpush1.bf16.msra.mxu0 %v441
    %567 = vmatprep.subr.bf16.mxu0 0
    %568 = vmatpush1.bf16.msra.mxu0 %v442
    %569 = vmatprep.subr.bf16.mxu0 0
    %570 = vmatpush1.bf16.msra.mxu0 %v443
    %571 = vmatprep.subr.bf16.mxu0 0
    %572 = vmatpush1.bf16.msra.mxu0 %v444
    %573 = vmatprep.subr.bf16.mxu0 0
    %574 = vmatpush1.bf16.msra.mxu0 %v445
    %575 = vmatprep.subr.bf16.mxu0 0
    %576 = vmatpush1.bf16.msra.mxu0 %v446
    %577 = vmatprep.subr.bf16.mxu0 0
    %578 = vmatpush1.bf16.msra.mxu0 %v447
    %579 = vmatprep.subr.bf16.mxu0 0
    %580 = vmatpush1.bf16.msra.mxu0 %v448
    %581 = vmatprep.subr.bf16.mxu0 0
    %582 = vmatpush1.bf16.msra.mxu0 %v449
    %583 = vmatprep.subr.bf16.mxu0 0
    %584 = vmatpush1.bf16.msra.mxu0 %v450
    %585 = vmatprep.subr.bf16.mxu0 0
    %586 = vmatpush1.bf16.msra.mxu0 %v451
    %587 = vmatprep.subr.bf16.mxu0 0
    %588 = vmatpush1.bf16.msra.mxu0 %v452
    %589 = vmatprep.mubr.bf16.mxu0 %v123
    %590 = vmatmul.mubr.bf16.gmra.mrb[0].mxu0 %v122
    %v591 = vpop.f32.mrb[0].mxu0
    %v592 = vadd.f32 %v552, %v591
    %v593 = vpop.f32.mrb[0].mxu0
    %v594 = vpop.f32.mrb[0].mxu0
    %v595 = vpop.f32.mrb[0].mxu0
    %596 = vdwg.mxu0
    %597 = vmatprep.subr.bf16.mxu0 0
    %598 = vmatpush1.bf16.msra.mxu0 %v453
    %599 = vmatprep.subr.bf16.mxu0 0
    %600 = vmatpush1.bf16.msra.mxu0 %v454
    %601 = vmatprep.subr.bf16.mxu0 0
    %602 = vmatpush1.bf16.msra.mxu0 %v455
    %603 = vmatprep.subr.bf16.mxu0 0
    %604 = vmatpush1.bf16.msra.mxu0 %v456
    %605 = vmatprep.subr.bf16.mxu0 0
    %606 = vmatpush1.bf16.msra.mxu0 %v457
    %607 = vmatprep.subr.bf16.mxu0 0
    %608 = vmatpush1.bf16.msra.mxu0 %v458
    %609 = vmatprep.subr.bf16.mxu0 0
    %610 = vmatpush1.bf16.msra.mxu0 %v459
    %611 = vmatprep.subr.bf16.mxu0 0
    %612 = vmatpush1.bf16.msra.mxu0 %v460
    %613 = vmatprep.subr.bf16.mxu0 0
    %614 = vmatpush1.bf16.msra.mxu0 %v461
    %615 = vmatprep.subr.bf16.mxu0 0
    %616 = vmatpush1.bf16.msra.mxu0 %v462
    %617 = vmatprep.subr.bf16.mxu0 0
    %618 = vmatpush1.bf16.msra.mxu0 %v463
    %619 = vmatprep.subr.bf16.mxu0 0
    %620 = vmatpush1.bf16.msra.mxu0 %v464
    %621 = vmatprep.subr.bf16.mxu0 0
    %622 = vmatpush1.bf16.msra.mxu0 %v465
    %623 = vmatprep.subr.bf16.mxu0 0
    %624 = vmatpush1.bf16.msra.mxu0 %v466
    %625 = vmatprep.subr.bf16.mxu0 0
    %626 = vmatpush1.bf16.msra.mxu0 %v467
    %627 = vmatprep.subr.bf16.mxu0 0
    %628 = vmatpush1.bf16.msra.mxu0 %v468
    %629 = vmatprep.mubr.bf16.mxu0 %v125
    %630 = vmatmul.mubr.bf16.gmra.mrb[0].mxu0 %v124
    %v631 = vpop.f32.mrb[0].mxu0
    %v632 = vadd.f32 %v592, %v631
    %v633 = vpop.f32.mrb[0].mxu0
    %v634 = vpop.f32.mrb[0].mxu0
    %v635 = vpop.f32.mrb[0].mxu0
    %636 = vdwg.mxu0
    %637 = vst [vmem:[#allocation7] sm:$0xff] %v632
    // Predicated region
    $region22: #{tpu_custom_call.1} parent=1 // pred_check
      _
    $region23: #{tpu_custom_call.1} parent=1 // pred_check_branch
      %639 = sbr.rel (0) target = $region25
    $region24: #{tpu_custom_call.1} parent=1 // pred_region
      %s641 = ssub.s32 128, 32
      %642 = vsyncadd [#allocation4], %s641
      %s643 = sshll.u32 [#allocation7], 4
      %s644 = int_to_ptr.vmem [resolvable:$true] %s643
      %649 = dma.vmem_to_hbm [thread:$0]  %s644, 32, %s3, [#allocation4], 32, 32, 2
    $region25: #{tpu_custom_call.1} parent=1 // pred_fallthru
      _
    // Predicated region
    $region26: #{tpu_custom_call.1} parent=1 // pred_check
      _
    $region27: #{tpu_custom_call.1} parent=1 // pred_check_branch
      %651 = sbr.rel (0) target = $region29
    $region28: #{tpu_custom_call.1} parent=1 // pred_region
      %652 = dma.done [#allocation4], 128
    $region29: #{tpu_custom_call.1} parent=1 // pred_fallthru
      _
    %653 = vsyncpa [#allocation3], 1
    %654 = vsyncpa [#allocation6], 1
    %655 = vsyncpa [#allocation4], 1

</llo_original>
